<compile_context>
chip_gen: v7x
topology: tpu7x:2x2x1
jax: 0.10.0
libtpu: 0.0.40
codegen_flags: <defaults>
</compile_context>

<pallas_src>
import functools

import jax
import jax.numpy as jnp
from jax.experimental import pallas as pl
from jax.experimental.pallas import tpu as pltpu

LANE = 128      # TPU lane width (last-dim alignment target)
SUBLANE = 8     # TPU sublane width (second-to-last-dim alignment target)


def _round_up(x, m):
    return ((x + m - 1) // m) * m


def dqn_mlp_kernel(x_ref,
                   w1_ref, b1_ref,
                   w2_ref, b2_ref,
                   w3_ref, b3_ref,
                   w4_ref, b4_ref,
                   w5_ref, b5_ref,
                   out_ref, *, compute_dtype):
    """Fused 5-layer MLP forward over one (TB, in_dim) batch tile.

    Weights/biases are VMEM-resident (constant index_map); only the activation
    tile is pipelined over the batch grid.  Matmuls run on the MXU with f32
    accumulation; bias-add / ReLU are f32 on the VPU; hidden activations are
    cast back to `compute_dtype` (f32 or bf16) before feeding the next matmul.
    """
    h = x_ref[...]                                           # (TB, in_dim)
    hidden_layers = ((w1_ref, b1_ref), (w2_ref, b2_ref),
                     (w3_ref, b3_ref), (w4_ref, b4_ref))
    for w_ref, b_ref in hidden_layers:
        h = jnp.dot(h, w_ref[...], preferred_element_type=jnp.float32) + b_ref[...]
        h = jnp.maximum(h, 0.0).astype(compute_dtype)
    h = jnp.dot(h, w5_ref[...], preferred_element_type=jnp.float32) + b5_ref[...]
    out_ref[...] = h.astype(out_ref.dtype)


def init_params(key, in_dim, n_actions):
    """PyTorch nn.Linear default init: U[-1/sqrt(fan_in), +1/sqrt(fan_in)].

    Weights are stored (in_features, out_features) — already transposed
    relative to PyTorch's (out, in) — so the kernel computes x @ W directly.
    """
    dims = [in_dim, 50, 100, 200, 400, n_actions]
    params = []
    for i in range(5):
        fan_in, fan_out = dims[i], dims[i + 1]
        key, kw, kb = jax.random.split(key, 3)
        bound = 1.0 / jnp.sqrt(jnp.float32(fan_in))
        w = jax.random.uniform(kw, (fan_in, fan_out), jnp.float32, -bound, bound)
        b = jax.random.uniform(kb, (1, fan_out), jnp.float32, -bound, bound)
        params.append((w, b))
    return params


def pad_params(params, compute_dtype=jnp.float32):
    """Zero-pad layer widths to multiples of 128 lanes (50/100/200/400/nA ->
    128/128/256/512/128) and cast weights to the MXU compute dtype.

    Zero-padded weight rows/cols + zero-padded biases keep the forward pass
    exact: ReLU(0) = 0, so padded units contribute nothing downstream.
    Call ONCE per weight set and reuse across forward calls.
    """
    padded = []
    prev_out_pad = None
    for i, (w, b) in enumerate(params):
        fan_in, fan_out = w.shape
        in_pad = fan_in if i == 0 else prev_out_pad        # match previous layer's padded width
        out_pad = _round_up(fan_out, LANE)
        wp = jnp.zeros((in_pad, out_pad), compute_dtype)
        wp = wp.at[:fan_in, :fan_out].set(w.astype(compute_dtype))
        bp = jnp.zeros((1, out_pad), jnp.float32)
        bp = bp.at[:, :fan_out].set(b.astype(jnp.float32))
        padded.append((wp, bp))
        prev_out_pad = out_pad
    return padded


@functools.partial(jax.jit,
                   static_argnames=("n_actions", "compute_dtype", "batch_tile"))
def dqn_forward(x, padded_params, n_actions, *, compute_dtype=jnp.float32,
                batch_tile=128):
    """Fused MLP forward. x: (batch, in_dim). Returns (batch, n_actions) f32."""
    batch, in_dim = x.shape
    out_pad = padded_params[-1][0].shape[1]

    # Batch tile: full 128-row tiles for real DQN batches; a single
    # sublane-aligned tile for tiny batches (no wasted padding rows).
    tb = batch_tile if batch >= batch_tile else max(SUBLANE, _round_up(batch, SUBLANE))
    batch_pad = _round_up(batch, tb)
    if batch_pad != batch:
        x = jnp.pad(x, ((0, batch_pad - batch), (0, 0)))
    x = x.astype(compute_dtype)      # single cast (mirrors the module's x.float())

    flat_inputs = []
    in_specs = [pl.BlockSpec((tb, in_dim), lambda i: (i, 0))]      # pipelined x tile
    for w, b in padded_params:
        flat_inputs.extend([w, b])
        # Full-array blocks with a constant index_map -> weights/biases stay
        # resident in VMEM across batch-grid steps (no per-step re-DMA).
        in_specs.append(pl.BlockSpec(w.shape, lambda i: (0, 0)))
        in_specs.append(pl.BlockSpec(b.shape, lambda i: (0, 0)))

    grid = (batch_pad // tb,)

    out_padded = pl.pallas_call(
        functools.partial(dqn_mlp_kernel, compute_dtype=compute_dtype),
        out_shape=jax.ShapeDtypeStruct((batch_pad, out_pad), jnp.float32),
        grid=grid,
        in_specs=in_specs,
        out_specs=pl.BlockSpec((tb, out_pad), lambda i: (i, 0)),
        compiler_params=pltpu.CompilerParams(
            # Batch tiles are independent -> shard grid steps across the two
            # TensorCores on v7x; harmless on single-TC v5e/v6e.
            dimension_semantics=("parallel",),
            # ~1 MiB of padded f32 weights + double-buffered activation tiles;
            # 16 MiB leaves ample headroom and stays well under v7x's 64 MiB.
            vmem_limit_bytes=16 << 20,
        ),
    )(x, *flat_inputs)

    return out_padded[:batch, :n_actions]


def dqn_forward_ref(x, params):
    """Pure-JAX f32 reference on the unpadded weights."""
    h = x.astype(jnp.float32)
    for i, (w, b) in enumerate(params):
        h = h @ w + b
        if i < len(params) - 1:
            h = jnp.maximum(h, 0.0)
    return h


if __name__ == "__main__":
    # Shapes consistent with the module: input_dims=[8], n_actions=4, batch=2.
    in_dim = 8
    n_actions = 4
    batch = 2

    key = jax.random.PRNGKey(0)
    key, kx = jax.random.split(key)
    x = jax.random.normal(kx, (batch, in_dim), jnp.float32)
    params = init_params(key, in_dim, n_actions)

    ref = dqn_forward_ref(x, params)

    # f32 path: exact semantics of the PyTorch module.
    p_f32 = pad_params(params, compute_dtype=jnp.float32)
    out_f32 = jax.block_until_ready(
        dqn_forward(x, p_f32, n_actions, compute_dtype=jnp.float32))
    assert out_f32.shape == (batch, n_actions)
    assert jnp.allclose(out_f32, ref, atol=1e-4, rtol=1e-4), "f32 mismatch vs reference"

    # bf16-MXU fast path (v6e/v7x): bf16 operands, f32 accumulation.
    p_bf16 = pad_params(params, compute_dtype=jnp.bfloat16)
    out_bf16 = jax.block_until_ready(
        dqn_forward(x, p_bf16, n_actions, compute_dtype=jnp.bfloat16))
    assert out_bf16.shape == (batch, n_actions)
    assert jnp.allclose(out_bf16, ref, atol=5e-2, rtol=5e-2), "bf16 mismatch vs reference"

    print("KERNEL_OK")
</pallas_src>

<mosaic_0001>
module attributes {stable_mosaic.version = 11 : i64} {
  func.func @dqn_mlp_kernel(%arg0: i32, %arg1: memref<8x8xf32, #tpu.memory_space<vmem>>, %arg2: memref<8x128xf32, #tpu.memory_space<vmem>>, %arg3: memref<1x128xf32, #tpu.memory_space<vmem>>, %arg4: memref<128x128xf32, #tpu.memory_space<vmem>>, %arg5: memref<1x128xf32, #tpu.memory_space<vmem>>, %arg6: memref<128x256xf32, #tpu.memory_space<vmem>>, %arg7: memref<1x256xf32, #tpu.memory_space<vmem>>, %arg8: memref<256x512xf32, #tpu.memory_space<vmem>>, %arg9: memref<1x512xf32, #tpu.memory_space<vmem>>, %arg10: memref<512x128xf32, #tpu.memory_space<vmem>>, %arg11: memref<1x128xf32, #tpu.memory_space<vmem>>, %arg12: memref<8x128xf32, #tpu.memory_space<vmem>>) attributes {dimension_semantics = [#tpu.dimension_semantics<parallel>], iteration_bounds = array<i64: 1>, scalar_prefetch = 0 : i64, scratch_operands = 0 : i64, tpu.core_type = #tpu.core_type<tc>, window_params = [{transform_indices = @transform_0, window_bounds = array<i64: 8, 8>}, {pipeline_mode = #tpu.pipeline_mode<synchronous>, transform_indices = @transform_1, window_bounds = array<i64: 8, 128>}, {pipeline_mode = #tpu.pipeline_mode<synchronous>, transform_indices = @transform_2, window_bounds = array<i64: 1, 128>}, {pipeline_mode = #tpu.pipeline_mode<synchronous>, transform_indices = @transform_3, window_bounds = array<i64: 128, 128>}, {pipeline_mode = #tpu.pipeline_mode<synchronous>, transform_indices = @transform_4, window_bounds = array<i64: 1, 128>}, {pipeline_mode = #tpu.pipeline_mode<synchronous>, transform_indices = @transform_5, window_bounds = array<i64: 128, 256>}, {pipeline_mode = #tpu.pipeline_mode<synchronous>, transform_indices = @transform_6, window_bounds = array<i64: 1, 256>}, {pipeline_mode = #tpu.pipeline_mode<synchronous>, transform_indices = @transform_7, window_bounds = array<i64: 256, 512>}, {pipeline_mode = #tpu.pipeline_mode<synchronous>, transform_indices = @transform_8, window_bounds = array<i64: 1, 512>}, {pipeline_mode = #tpu.pipeline_mode<synchronous>, transform_indices = @transform_9, window_bounds = array<i64: 512, 128>}, {pipeline_mode = #tpu.pipeline_mode<synchronous>, transform_indices = @transform_10, window_bounds = array<i64: 1, 128>}, {transform_indices = @transform_11, window_bounds = array<i64: 8, 128>}]} {
    %c0 = arith.constant 0 : index
    %c0_0 = arith.constant 0 : index
    %0 = vector.load %arg1[%c0, %c0_0] : memref<8x8xf32, #tpu.memory_space<vmem>>, vector<8x8xf32>
    %c0_1 = arith.constant 0 : index
    %c0_2 = arith.constant 0 : index
    %1 = vector.load %arg2[%c0_1, %c0_2] : memref<8x128xf32, #tpu.memory_space<vmem>>, vector<8x128xf32>
    %cst = arith.constant dense<0.000000e+00> : vector<8x128xf32>
    %2 = tpu.matmul %0, %1, %cst {dimension_numbers = #tpu.dot_dimension_numbers<[1], [0], [0], [1], [0, 0, 1, 1], [], []>} : vector<8x8xf32>, vector<8x128xf32>, vector<8x128xf32> -> vector<8x128xf32>
    %c0_3 = arith.constant 0 : index
    %c0_4 = arith.constant 0 : index
    %3 = vector.load %arg3[%c0_3, %c0_4] : memref<1x128xf32, #tpu.memory_space<vmem>>, vector<1x128xf32>
    %4 = vector.broadcast %3 : vector<1x128xf32> to vector<8x128xf32>
    %5 = arith.addf %2, %4 : vector<8x128xf32>
    %cst_5 = arith.constant 0.000000e+00 : f32
    %6 = vector.broadcast %cst_5 : f32 to vector<8x128xf32>
    %7 = arith.maximumf %5, %6 : vector<8x128xf32>
    %c0_6 = arith.constant 0 : index
    %c0_7 = arith.constant 0 : index
    %8 = vector.load %arg4[%c0_6, %c0_7] : memref<128x128xf32, #tpu.memory_space<vmem>>, vector<128x128xf32>
    %cst_8 = arith.constant dense<0.000000e+00> : vector<8x128xf32>
    %9 = tpu.matmul %7, %8, %cst_8 {dimension_numbers = #tpu.dot_dimension_numbers<[1], [0], [0], [1], [0, 0, 1, 1], [], []>} : vector<8x128xf32>, vector<128x128xf32>, vector<8x128xf32> -> vector<8x128xf32>
    %c0_9 = arith.constant 0 : index
    %c0_10 = arith.constant 0 : index
    %10 = vector.load %arg5[%c0_9, %c0_10] : memref<1x128xf32, #tpu.memory_space<vmem>>, vector<1x128xf32>
    %11 = vector.broadcast %10 : vector<1x128xf32> to vector<8x128xf32>
    %12 = arith.addf %9, %11 : vector<8x128xf32>
    %cst_11 = arith.constant 0.000000e+00 : f32
    %13 = vector.broadcast %cst_11 : f32 to vector<8x128xf32>
    %14 = arith.maximumf %12, %13 : vector<8x128xf32>
    %c0_12 = arith.constant 0 : index
    %c0_13 = arith.constant 0 : index
    %15 = vector.load %arg6[%c0_12, %c0_13] : memref<128x256xf32, #tpu.memory_space<vmem>>, vector<128x256xf32>
    %cst_14 = arith.constant dense<0.000000e+00> : vector<8x256xf32>
    %16 = tpu.matmul %14, %15, %cst_14 {dimension_numbers = #tpu.dot_dimension_numbers<[1], [0], [0], [1], [0, 0, 1, 1], [], []>} : vector<8x128xf32>, vector<128x256xf32>, vector<8x256xf32> -> vector<8x256xf32>
    %c0_15 = arith.constant 0 : index
    %c0_16 = arith.constant 0 : index
    %17 = vector.load %arg7[%c0_15, %c0_16] : memref<1x256xf32, #tpu.memory_space<vmem>>, vector<1x256xf32>
    %18 = vector.broadcast %17 : vector<1x256xf32> to vector<8x256xf32>
    %19 = arith.addf %16, %18 : vector<8x256xf32>
    %cst_17 = arith.constant 0.000000e+00 : f32
    %20 = vector.broadcast %cst_17 : f32 to vector<8x256xf32>
    %21 = arith.maximumf %19, %20 : vector<8x256xf32>
    %c0_18 = arith.constant 0 : index
    %c0_19 = arith.constant 0 : index
    %22 = vector.load %arg8[%c0_18, %c0_19] : memref<256x512xf32, #tpu.memory_space<vmem>>, vector<256x512xf32>
    %cst_20 = arith.constant dense<0.000000e+00> : vector<8x512xf32>
    %23 = tpu.matmul %21, %22, %cst_20 {dimension_numbers = #tpu.dot_dimension_numbers<[1], [0], [0], [1], [0, 0, 1, 1], [], []>} : vector<8x256xf32>, vector<256x512xf32>, vector<8x512xf32> -> vector<8x512xf32>
    %c0_21 = arith.constant 0 : index
    %c0_22 = arith.constant 0 : index
    %24 = vector.load %arg9[%c0_21, %c0_22] : memref<1x512xf32, #tpu.memory_space<vmem>>, vector<1x512xf32>
    %25 = vector.broadcast %24 : vector<1x512xf32> to vector<8x512xf32>
    %26 = arith.addf %23, %25 : vector<8x512xf32>
    %cst_23 = arith.constant 0.000000e+00 : f32
    %27 = vector.broadcast %cst_23 : f32 to vector<8x512xf32>
    %28 = arith.maximumf %26, %27 : vector<8x512xf32>
    %c0_24 = arith.constant 0 : index
    %c0_25 = arith.constant 0 : index
    %29 = vector.load %arg10[%c0_24, %c0_25] : memref<512x128xf32, #tpu.memory_space<vmem>>, vector<512x128xf32>
    %cst_26 = arith.constant dense<0.000000e+00> : vector<8x128xf32>
    %30 = tpu.matmul %28, %29, %cst_26 {dimension_numbers = #tpu.dot_dimension_numbers<[1], [0], [0], [1], [0, 0, 1, 1], [], []>} : vector<8x512xf32>, vector<512x128xf32>, vector<8x128xf32> -> vector<8x128xf32>
    %c0_27 = arith.constant 0 : index
    %c0_28 = arith.constant 0 : index
    %31 = vector.load %arg11[%c0_27, %c0_28] : memref<1x128xf32, #tpu.memory_space<vmem>>, vector<1x128xf32>
    %32 = vector.broadcast %31 : vector<1x128xf32> to vector<8x128xf32>
    %33 = arith.addf %30, %32 : vector<8x128xf32>
    %c0_29 = arith.constant 0 : index
    %c0_30 = arith.constant 0 : index
    %34 = vector.load %arg12[%c0_29, %c0_30] : memref<8x128xf32, #tpu.memory_space<vmem>>, vector<8x128xf32>
    tpu.vector_store %arg12[%c0_29, %c0_30], %33 {strides = array<i32>} : memref<8x128xf32, #tpu.memory_space<vmem>>, vector<8x128xf32>,
    return
  }
  func.func @transform_0(%arg0: i32) -> (i32, i32) {
    %c0_i32 = arith.constant 0 : i32
    %c0_i32_0 = arith.constant 0 : i32
    return %arg0, %c0_i32 : i32, i32
  }
  func.func @transform_1(%arg0: i32) -> (i32, i32) {
    %c0_i32 = arith.constant 0 : i32
    %c0_i32_0 = arith.constant 0 : i32
    %c0_i32_1 = arith.constant 0 : i32
    return %c0_i32, %c0_i32_0 : i32, i32
  }
  func.func @transform_2(%arg0: i32) -> (i32, i32) {
    %c0_i32 = arith.constant 0 : i32
    %c0_i32_0 = arith.constant 0 : i32
    %c0_i32_1 = arith.constant 0 : i32
    return %c0_i32, %c0_i32_0 : i32, i32
  }
  func.func @transform_3(%arg0: i32) -> (i32, i32) {
    %c0_i32 = arith.constant 0 : i32
    %c0_i32_0 = arith.constant 0 : i32
    %c0_i32_1 = arith.constant 0 : i32
    return %c0_i32, %c0_i32_0 : i32, i32
  }
  func.func @transform_4(%arg0: i32) -> (i32, i32) {
    %c0_i32 = arith.constant 0 : i32
    %c0_i32_0 = arith.constant 0 : i32
    %c0_i32_1 = arith.constant 0 : i32
    return %c0_i32, %c0_i32_0 : i32, i32
  }
  func.func @transform_5(%arg0: i32) -> (i32, i32) {
    %c0_i32 = arith.constant 0 : i32
    %c0_i32_0 = arith.constant 0 : i32
    %c0_i32_1 = arith.constant 0 : i32
    return %c0_i32, %c0_i32_0 : i32, i32
  }
  func.func @transform_6(%arg0: i32) -> (i32, i32) {
    %c0_i32 = arith.constant 0 : i32
    %c0_i32_0 = arith.constant 0 : i32
    %c0_i32_1 = arith.constant 0 : i32
    return %c0_i32, %c0_i32_0 : i32, i32
  }
  func.func @transform_7(%arg0: i32) -> (i32, i32) {
    %c0_i32 = arith.constant 0 : i32
    %c0_i32_0 = arith.constant 0 : i32
    %c0_i32_1 = arith.constant 0 : i32
    return %c0_i32, %c0_i32_0 : i32, i32
  }
  func.func @transform_8(%arg0: i32) -> (i32, i32) {
    %c0_i32 = arith.constant 0 : i32
    %c0_i32_0 = arith.constant 0 : i32
    %c0_i32_1 = arith.constant 0 : i32
    return %c0_i32, %c0_i32_0 : i32, i32
  }
  func.func @transform_9(%arg0: i32) -> (i32, i32) {
    %c0_i32 = arith.constant 0 : i32
    %c0_i32_0 = arith.constant 0 : i32
    %c0_i32_1 = arith.constant 0 : i32
    return %c0_i32, %c0_i32_0 : i32, i32
  }
  func.func @transform_10(%arg0: i32) -> (i32, i32) {
    %c0_i32 = arith.constant 0 : i32
    %c0_i32_0 = arith.constant 0 : i32
    %c0_i32_1 = arith.constant 0 : i32
    return %c0_i32, %c0_i32_0 : i32, i32
  }
  func.func @transform_11(%arg0: i32) -> (i32, i32) {
    %c0_i32 = arith.constant 0 : i32
    %c0_i32_0 = arith.constant 0 : i32
    return %arg0, %c0_i32 : i32, i32
  }
}

</mosaic_0001>

<llo_original>
// kernel: dqn_forward.1
$region0: #{dqn_forward.1}
  #allocation0 [shape = 'u32[]', space=smem, size = 0x4, offset = 0x4, fixed_abs, tag = 'smem constant byte address 0x4 - core index']
  #allocation1 [shape = 'u32[144,128]{1,0:T(1,128)}', space=vmem, size = 0x12000, scoped, tag = 'internal scratch']
  %s0 = inlined_call_operand.vmem [shape: f32[8,8], index: 0, kind: input, shape index: {}]
  %s1 = inlined_call_operand.vmem [shape: f32[8,128], index: 1, kind: input, shape index: {}]
  %s2 = inlined_call_operand.vmem [shape: f32[1,128], index: 2, kind: input, shape index: {}]
  %s3 = inlined_call_operand.hbm [shape: f32[128,128], index: 3, kind: input, shape index: {}]
  %s4 = inlined_call_operand.vmem [shape: f32[1,128], index: 4, kind: input, shape index: {}]
  %s5 = inlined_call_operand.hbm [shape: f32[128,256], index: 5, kind: input, shape index: {}]
  %s6 = inlined_call_operand.vmem [shape: f32[1,256], index: 6, kind: input, shape index: {}]
  %s7 = inlined_call_operand.hbm [shape: f32[256,512], index: 7, kind: input, shape index: {}]
  %s8 = inlined_call_operand.vmem [shape: f32[1,512], index: 8, kind: input, shape index: {}]
  %s9 = inlined_call_operand.hbm [shape: f32[512,128], index: 9, kind: input, shape index: {}]
  %s10 = inlined_call_operand.vmem [shape: f32[1,128], index: 10, kind: input, shape index: {}]
  %s11 = inlined_call_operand.vmem [shape: f32[8,128], index: 11, kind: output, shape index: {}]
  %s12 = sld [smem:[#allocation0]]
  $region70: #{dqn_forward.1} parent=0
    _
  %s14 = ssub.s32 1, %s12
  %s15 = scalar_select 0, %s14, %s12
  $region1: #{dqn_forward.1} parent=0
    #allocation2 [shape = 'u8[65536]{0}', space=vmem, size = 0x10000, scoped, tag = 'input window, operand 3, single buffered']
    #allocation3 [shape = 's32[1]{0}', space=sflag, size = 0x4, scoped, tag = 'scoped memory for dqn_forward.1']
    #allocation4 [shape = 'u8[131072]{0}', space=vmem, size = 0x20000, scoped, tag = 'input window, operand 5, single buffered']
    #allocation5 [shape = 's32[1]{0}', space=sflag, size = 0x4, scoped, tag = 'scoped memory for dqn_forward.1']
    #allocation6 [shape = 'u8[524288]{0}', space=vmem, size = 0x80000, scoped, tag = 'input window, operand 7, single buffered']
    #allocation7 [shape = 'u8[262144]{0}', space=vmem, size = 0x40000, scoped, tag = 'input window, operand 9, single buffered']
    #allocation8 [shape = 's32[1]{0}', space=sflag, size = 0x4, scoped, tag = 'scoped memory for dqn_forward.1']
    %16 = vsyncpa [#allocation3], 0
    %17 = vsyncpa [#allocation5], 0
    %18 = vsyncpa [#allocation8], 0
    // Predicated region
    $region2: #{dqn_forward.1} parent=1 // pred_check
      _
    $region3: #{dqn_forward.1} parent=1 // pred_check_branch
      %20 = sbr.rel (0) target = $region5
    $region4: #{dqn_forward.1} parent=1 // pred_region
      _
    $region5: #{dqn_forward.1} parent=1 // pred_fallthru
      _
    // Predicated region
    $region6: #{dqn_forward.1} parent=1 // pred_check
      _
    $region7: #{dqn_forward.1} parent=1 // pred_check_branch
      %22 = sbr.rel (0) target = $region9
    $region8: #{dqn_forward.1} parent=1 // pred_region
      _
    $region9: #{dqn_forward.1} parent=1 // pred_fallthru
      _
    // Predicated region
    $region10: #{dqn_forward.1} parent=1 // pred_check
      _
    $region11: #{dqn_forward.1} parent=1 // pred_check_branch
      %24 = sbr.rel (0) target = $region13
    $region12: #{dqn_forward.1} parent=1 // pred_region
      _
    $region13: #{dqn_forward.1} parent=1 // pred_fallthru
      _
    // Predicated region
    $region14: #{dqn_forward.1} parent=1 // pred_check
      _
    $region15: #{dqn_forward.1} parent=1 // pred_check_branch
      %26 = sbr.rel (0) target = $region17
    $region16: #{dqn_forward.1} parent=1 // pred_region
      %s28 = ssub.s32 2048, 2048
      %29 = vsyncadd [#allocation3], %s28
      %s30 = sshll.u32 [#allocation2], 4
      %s31 = int_to_ptr.vmem [resolvable:$true] %s30
      %36 = dma.hbm_to_vmem [thread:$0]  %s3, 2048, %s31, [#allocation3], 128, 128, 8
    $region17: #{dqn_forward.1} parent=1 // pred_fallthru
      _
    // Predicated region
    $region18: #{dqn_forward.1} parent=1 // pred_check
      _
    $region19: #{dqn_forward.1} parent=1 // pred_check_branch
      %38 = sbr.rel (0) target = $region21
    $region20: #{dqn_forward.1} parent=1 // pred_region
      _
    $region21: #{dqn_forward.1} parent=1 // pred_fallthru
      _
    // Predicated region
    $region22: #{dqn_forward.1} parent=1 // pred_check
      _
    $region23: #{dqn_forward.1} parent=1 // pred_check_branch
      %40 = sbr.rel (0) target = $region25
    $region24: #{dqn_forward.1} parent=1 // pred_region
      %s42 = ssub.s32 4096, 4096
      %43 = vsyncadd [#allocation5], %s42
      %s44 = sshll.u32 [#allocation4], 4
      %s45 = int_to_ptr.vmem [resolvable:$true] %s44
      %50 = dma.hbm_to_vmem [thread:$0]  %s5, 4096, %s45, [#allocation5], 256, 256, 16
    $region25: #{dqn_forward.1} parent=1 // pred_fallthru
      _
    // Predicated region
    $region26: #{dqn_forward.1} parent=1 // pred_check
      _
    $region27: #{dqn_forward.1} parent=1 // pred_check_branch
      %52 = sbr.rel (0) target = $region29
    $region28: #{dqn_forward.1} parent=1 // pred_region
      _
    $region29: #{dqn_forward.1} parent=1 // pred_fallthru
      _
    // Predicated region
    $region30: #{dqn_forward.1} parent=1 // pred_check
      _
    $region31: #{dqn_forward.1} parent=1 // pred_check_branch
      %54 = sbr.rel (0) target = $region33
    $region32: #{dqn_forward.1} parent=1 // pred_region
      %s56 = ssub.s32 16384, 16384
      %57 = vsyncadd [#allocation5], %s56
      %s58 = sshll.u32 [#allocation6], 4
      %s59 = int_to_ptr.vmem [resolvable:$true] %s58
      %64 = dma.hbm_to_vmem [thread:$0]  %s7, 16384, %s59, [#allocation5], 512, 512, 32
    $region33: #{dqn_forward.1} parent=1 // pred_fallthru
      _
    // Predicated region
    $region34: #{dqn_forward.1} parent=1 // pred_check
      _
    $region35: #{dqn_forward.1} parent=1 // pred_check_branch
      %66 = sbr.rel (0) target = $region37
    $region36: #{dqn_forward.1} parent=1 // pred_region
      _
    $region37: #{dqn_forward.1} parent=1 // pred_fallthru
      _
    // Predicated region
    $region38: #{dqn_forward.1} parent=1 // pred_check
      _
    $region39: #{dqn_forward.1} parent=1 // pred_check_branch
      %68 = sbr.rel (0) target = $region41
    $region40: #{dqn_forward.1} parent=1 // pred_region
      %s70 = ssub.s32 8192, 8192
      %71 = vsyncadd [#allocation8], %s70
      %s72 = sshll.u32 [#allocation7], 4
      %s73 = int_to_ptr.vmem [resolvable:$true] %s72
      %78 = dma.hbm_to_vmem [thread:$0]  %s9, 8192, %s73, [#allocation8], 128, 128, 8
    $region41: #{dqn_forward.1} parent=1 // pred_fallthru
      _
    // Predicated region
    $region42: #{dqn_forward.1} parent=1 // pred_check
      _
    $region43: #{dqn_forward.1} parent=1 // pred_check_branch
      %80 = sbr.rel (0) target = $region45
    $region44: #{dqn_forward.1} parent=1 // pred_region
      _
    $region45: #{dqn_forward.1} parent=1 // pred_fallthru
      _
    // Predicated region
    $region46: #{dqn_forward.1} parent=1 // pred_check
      _
    $region47: #{dqn_forward.1} parent=1 // pred_check_branch
      %82 = sbr.rel (0) target = $region49
    $region48: #{dqn_forward.1} parent=1 // pred_region
      %83 = dma.done [#allocation3], 2048
    $region49: #{dqn_forward.1} parent=1 // pred_fallthru
      _
    // Predicated region
    $region50: #{dqn_forward.1} parent=1 // pred_check
      _
    $region51: #{dqn_forward.1} parent=1 // pred_check_branch
      %85 = sbr.rel (0) target = $region53
    $region52: #{dqn_forward.1} parent=1 // pred_region
      %86 = dma.done [#allocation5], 4096
    $region53: #{dqn_forward.1} parent=1 // pred_fallthru
      _
    // Predicated region
    $region54: #{dqn_forward.1} parent=1 // pred_check
      _
    $region55: #{dqn_forward.1} parent=1 // pred_check_branch
      %88 = sbr.rel (0) target = $region57
    $region56: #{dqn_forward.1} parent=1 // pred_region
      %89 = dma.done [#allocation5], 16384
    $region57: #{dqn_forward.1} parent=1 // pred_fallthru
      _
    // Predicated region
    $region58: #{dqn_forward.1} parent=1 // pred_check
      _
    $region59: #{dqn_forward.1} parent=1 // pred_check_branch
      %91 = sbr.rel (0) target = $region61
    $region60: #{dqn_forward.1} parent=1 // pred_region
      %92 = dma.done [#allocation8], 8192
    $region61: #{dqn_forward.1} parent=1 // pred_fallthru
      _
    %v93 = vld [vmem:[%s0] sm:$0xff]
    %v94 = vld [vmem:[%s1] sm:$0xff]
    %v95 = vld [vmem:[%s2] sm:$0x1]
    %v97 = vlaneseq
    %v98 = vshrl.u32 %v97, 7
    %v99 = vsub.s32 0, %v98
    %v100 = vrot.slane %v95, %v99
    %vm102 = vcmask 64512
    %v104 = vsel %vm102, %v93, 0
    %106 = vmatprep.subr.mxu0 0.0
    %107 = vmatpush1.msra.mxu0 %v94
    %108 = vmatprep.subr.mxu0 0.0
    %109 = vmatpush1.msra.mxu0 0.0
    %110 = vmatprep.subr.mxu0 0.0
    %111 = vmatpush1.msra.mxu0 0.0
    %112 = vmatprep.subr.mxu0 0.0
    %113 = vmatpush1.msra.mxu0 0.0
    %114 = vmatprep.subr.mxu0 0.0
    %115 = vmatpush1.msra.mxu0 0.0
    %116 = vmatprep.subr.mxu0 0.0
    %117 = vmatpush1.msra.mxu0 0.0
    %118 = vmatprep.subr.mxu0 0.0
    %119 = vmatpush1.msra.mxu0 0.0
    %120 = vmatprep.subr.mxu0 0.0
    %121 = vmatpush1.msra.mxu0 0.0
    %122 = vmatprep.subr.mxu0 0.0
    %123 = vmatpush1.msra.mxu0 0.0
    %124 = vmatprep.subr.mxu0 0.0
    %125 = vmatpush1.msra.mxu0 0.0
    %126 = vmatprep.subr.mxu0 0.0
    %127 = vmatpush1.msra.mxu0 0.0
    %128 = vmatprep.subr.mxu0 0.0
    %129 = vmatpush1.msra.mxu0 0.0
    %130 = vmatprep.subr.mxu0 0.0
    %131 = vmatpush1.msra.mxu0 0.0
    %132 = vmatprep.subr.mxu0 0.0
    %133 = vmatpush1.msra.mxu0 0.0
    %134 = vmatprep.subr.mxu0 0.0
    %135 = vmatpush1.msra.mxu0 0.0
    %136 = vmatprep.subr.mxu0 0.0
    %137 = vmatpush1.msra.mxu0 0.0
    %138 = vmatprep.subr.mxu0 0.0
    %139 = vmatpush1.msra.mxu0 0.0
    %140 = vmatprep.subr.mxu0 0.0
    %141 = vmatpush1.msra.mxu0 0.0
    %142 = vmatprep.subr.mxu0 0.0
    %143 = vmatpush1.msra.mxu0 0.0
    %144 = vmatprep.subr.mxu0 0.0
    %145 = vmatpush1.msra.mxu0 0.0
    %146 = vmatprep.subr.mxu0 0.0
    %147 = vmatpush1.msra.mxu0 0.0
    %148 = vmatprep.subr.mxu0 0.0
    %149 = vmatpush1.msra.mxu0 0.0
    %150 = vmatprep.subr.mxu0 0.0
    %151 = vmatpush1.msra.mxu0 0.0
    %152 = vmatprep.subr.mxu0 0.0
    %153 = vmatpush1.msra.mxu0 0.0
    %154 = vmatprep.subr.mxu0 0.0
    %155 = vmatpush1.msra.mxu0 0.0
    %156 = vmatprep.subr.mxu0 0.0
    %157 = vmatpush1.msra.mxu0 0.0
    %158 = vmatprep.subr.mxu0 0.0
    %159 = vmatpush1.msra.mxu0 0.0
    %160 = vmatprep.subr.mxu0 0.0
    %161 = vmatpush1.msra.mxu0 0.0
    %162 = vmatprep.subr.mxu0 0.0
    %163 = vmatpush1.msra.mxu0 0.0
    %164 = vmatprep.subr.mxu0 0.0
    %165 = vmatpush1.msra.mxu0 0.0
    %166 = vmatprep.subr.mxu0 0.0
    %167 = vmatpush1.msra.mxu0 0.0
    %168 = vmatprep.subr.mxu0 0.0
    %169 = vmatpush1.msra.mxu0 0.0
    %170 = vmatprep.mubr.f32.mxu0 0.0
    %171 = vmatmul.mubr.f32.gmra.mrb[0].mxu0 %v104
    %v172 = vpop.f32.mrb[0].mxu0
    %v173 = vadd.f32 %v100, %v172
    %v174 = vpop.f32.mrb[0].mxu0
    %175 = vdwg.mxu0
    %v176 = vmax.f32 %v173, 0.0
    %v177 = vld [vmem:[#allocation2] sm:$0xff]
    %v178 = vld [vmem:[#allocation2 + $0x8] sm:$0xff]
    %v179 = vld [vmem:[#allocation2 + $0x10] sm:$0xff]
    %v180 = vld [vmem:[#allocation2 + $0x18] sm:$0xff]
    %v181 = vld [vmem:[#allocation2 + $0x20] sm:$0xff]
    %v182 = vld [vmem:[#allocation2 + $0x28] sm:$0xff]
    %v183 = vld [vmem:[#allocation2 + $0x30] sm:$0xff]
    %v184 = vld [vmem:[#allocation2 + $0x38] sm:$0xff]
    %v185 = vld [vmem:[#allocation2 + $0x40] sm:$0xff]
    %v186 = vld [vmem:[#allocation2 + $0x48] sm:$0xff]
    %v187 = vld [vmem:[#allocation2 + $0x50] sm:$0xff]
    %v188 = vld [vmem:[#allocation2 + $0x58] sm:$0xff]
    %v189 = vld [vmem:[#allocation2 + $0x60] sm:$0xff]
    %v190 = vld [vmem:[#allocation2 + $0x68] sm:$0xff]
    %v191 = vld [vmem:[#allocation2 + $0x70] sm:$0xff]
    %v192 = vld [vmem:[#allocation2 + $0x78] sm:$0xff]
    %v193 = vld [vmem:[%s4] sm:$0x1]
    %v195 = vlaneseq
    %v196 = vshrl.u32 %v195, 7
    %v197 = vsub.s32 0, %v196
    %v198 = vrot.slane %v193, %v197
    %200 = vmatprep.subr.mxu0 0.0
    %201 = vmatpush1.msra.mxu0 %v177
    %202 = vmatprep.subr.mxu0 0.0
    %203 = vmatpush1.msra.mxu0 %v178
    %204 = vmatprep.subr.mxu0 0.0
    %205 = vmatpush1.msra.mxu0 %v179
    %206 = vmatprep.subr.mxu0 0.0
    %207 = vmatpush1.msra.mxu0 %v180
    %208 = vmatprep.subr.mxu0 0.0
    %209 = vmatpush1.msra.mxu0 %v181
    %210 = vmatprep.subr.mxu0 0.0
    %211 = vmatpush1.msra.mxu0 %v182
    %212 = vmatprep.subr.mxu0 0.0
    %213 = vmatpush1.msra.mxu0 %v183
    %214 = vmatprep.subr.mxu0 0.0
    %215 = vmatpush1.msra.mxu0 %v184
    %216 = vmatprep.subr.mxu0 0.0
    %217 = vmatpush1.msra.mxu0 %v185
    %218 = vmatprep.subr.mxu0 0.0
    %219 = vmatpush1.msra.mxu0 %v186
    %220 = vmatprep.subr.mxu0 0.0
    %221 = vmatpush1.msra.mxu0 %v187
    %222 = vmatprep.subr.mxu0 0.0
    %223 = vmatpush1.msra.mxu0 %v188
    %224 = vmatprep.subr.mxu0 0.0
    %225 = vmatpush1.msra.mxu0 %v189
    %226 = vmatprep.subr.mxu0 0.0
    %227 = vmatpush1.msra.mxu0 %v190
    %228 = vmatprep.subr.mxu0 0.0
    %229 = vmatpush1.msra.mxu0 %v191
    %230 = vmatprep.subr.mxu0 0.0
    %231 = vmatpush1.msra.mxu0 %v192
    %232 = vmatprep.subr.mxu0 0.0
    %233 = vmatpush1.msra.mxu0 0.0
    %234 = vmatprep.subr.mxu0 0.0
    %235 = vmatpush1.msra.mxu0 0.0
    %236 = vmatprep.subr.mxu0 0.0
    %237 = vmatpush1.msra.mxu0 0.0
    %238 = vmatprep.subr.mxu0 0.0
    %239 = vmatpush1.msra.mxu0 0.0
    %240 = vmatprep.subr.mxu0 0.0
    %241 = vmatpush1.msra.mxu0 0.0
    %242 = vmatprep.subr.mxu0 0.0
    %243 = vmatpush1.msra.mxu0 0.0
    %244 = vmatprep.subr.mxu0 0.0
    %245 = vmatpush1.msra.mxu0 0.0
    %246 = vmatprep.subr.mxu0 0.0
    %247 = vmatpush1.msra.mxu0 0.0
    %248 = vmatprep.subr.mxu0 0.0
    %249 = vmatpush1.msra.mxu0 0.0
    %250 = vmatprep.subr.mxu0 0.0
    %251 = vmatpush1.msra.mxu0 0.0
    %252 = vmatprep.subr.mxu0 0.0
    %253 = vmatpush1.msra.mxu0 0.0
    %254 = vmatprep.subr.mxu0 0.0
    %255 = vmatpush1.msra.mxu0 0.0
    %256 = vmatprep.subr.mxu0 0.0
    %257 = vmatpush1.msra.mxu0 0.0
    %258 = vmatprep.subr.mxu0 0.0
    %259 = vmatpush1.msra.mxu0 0.0
    %260 = vmatprep.subr.mxu0 0.0
    %261 = vmatpush1.msra.mxu0 0.0
    %262 = vmatprep.subr.mxu0 0.0
    %263 = vmatpush1.msra.mxu0 0.0
    %264 = vmatprep.mubr.f32.mxu0 0.0
    %265 = vmatmul.mubr.f32.gmra.mrb[0].mxu0 %v176
    %v266 = vpop.f32.mrb[0].mxu0
    %v267 = vadd.f32 %v198, %v266
    %v268 = vpop.f32.mrb[0].mxu0
    %269 = vdwg.mxu0
    %v270 = vmax.f32 %v267, 0.0
    %v271 = vld [vmem:[#allocation4] sm:$0xff]
    %v272 = vld [vmem:[#allocation4 + $0x8] sm:$0xff]
    %v273 = vld [vmem:[#allocation4 + $0x10] sm:$0xff]
    %v274 = vld [vmem:[#allocation4 + $0x18] sm:$0xff]
    %v275 = vld [vmem:[#allocation4 + $0x20] sm:$0xff]
    %v276 = vld [vmem:[#allocation4 + $0x28] sm:$0xff]
    %v277 = vld [vmem:[#allocation4 + $0x30] sm:$0xff]
    %v278 = vld [vmem:[#allocation4 + $0x38] sm:$0xff]
    %v279 = vld [vmem:[#allocation4 + $0x40] sm:$0xff]
    %v280 = vld [vmem:[#allocation4 + $0x48] sm:$0xff]
    %v281 = vld [vmem:[#allocation4 + $0x50] sm:$0xff]
    %v282 = vld [vmem:[#allocation4 + $0x58] sm:$0xff]
    %v283 = vld [vmem:[#allocation4 + $0x60] sm:$0xff]
    %v284 = vld [vmem:[#allocation4 + $0x68] sm:$0xff]
    %v285 = vld [vmem:[#allocation4 + $0x70] sm:$0xff]
    %v286 = vld [vmem:[#allocation4 + $0x78] sm:$0xff]
    %v287 = vld [vmem:[#allocation4 + $0x80] sm:$0xff]
    %v288 = vld [vmem:[#allocation4 + $0x88] sm:$0xff]
    %v289 = vld [vmem:[#allocation4 + $0x90] sm:$0xff]
    %v290 = vld [vmem:[#allocation4 + $0x98] sm:$0xff]
    %v291 = vld [vmem:[#allocation4 + $0xa0] sm:$0xff]
    %v292 = vld [vmem:[#allocation4 + $0xa8] sm:$0xff]
    %v293 = vld [vmem:[#allocation4 + $0xb0] sm:$0xff]
    %v294 = vld [vmem:[#allocation4 + $0xb8] sm:$0xff]
    %v295 = vld [vmem:[#allocation4 + $0xc0] sm:$0xff]
    %v296 = vld [vmem:[#allocation4 + $0xc8] sm:$0xff]
    %v297 = vld [vmem:[#allocation4 + $0xd0] sm:$0xff]
    %v298 = vld [vmem:[#allocation4 + $0xd8] sm:$0xff]
    %v299 = vld [vmem:[#allocation4 + $0xe0] sm:$0xff]
    %v300 = vld [vmem:[#allocation4 + $0xe8] sm:$0xff]
    %v301 = vld [vmem:[#allocation4 + $0xf0] sm:$0xff]
    %v302 = vld [vmem:[#allocation4 + $0xf8] sm:$0xff]
    %v303 = vld [vmem:[%s6] sm:$0x3]
    %v305 = vlaneseq
    %v306 = vshrl.u32 %v305, 7
    %v307 = vsub.s32 0, %v306
    %v308 = vrot.slane %v303, %v307
    %v309 = vlaneseq
    %v310 = vshrl.u32 %v309, 7
    %v311 = vsub.s32 1, %v310
    %v312 = vrot.slane %v303, %v311
    %315 = vmatprep.subr.mxu0 %v272
    %316 = vmatpush1.msra.mxu0 %v271
    %317 = vmatprep.subr.mxu0 %v274
    %318 = vmatpush1.msra.mxu0 %v273
    %319 = vmatprep.subr.mxu0 %v276
    %320 = vmatpush1.msra.mxu0 %v275
    %321 = vmatprep.subr.mxu0 %v278
    %322 = vmatpush1.msra.mxu0 %v277
    %323 = vmatprep.subr.mxu0 %v280
    %324 = vmatpush1.msra.mxu0 %v279
    %325 = vmatprep.subr.mxu0 %v282
    %326 = vmatpush1.msra.mxu0 %v281
    %327 = vmatprep.subr.mxu0 %v284
    %328 = vmatpush1.msra.mxu0 %v283
    %329 = vmatprep.subr.mxu0 %v286
    %330 = vmatpush1.msra.mxu0 %v285
    %331 = vmatprep.subr.mxu0 %v288
    %332 = vmatpush1.msra.mxu0 %v287
    %333 = vmatprep.subr.mxu0 %v290
    %334 = vmatpush1.msra.mxu0 %v289
    %335 = vmatprep.subr.mxu0 %v292
    %336 = vmatpush1.msra.mxu0 %v291
    %337 = vmatprep.subr.mxu0 %v294
    %338 = vmatpush1.msra.mxu0 %v293
    %339 = vmatprep.subr.mxu0 %v296
    %340 = vmatpush1.msra.mxu0 %v295
    %341 = vmatprep.subr.mxu0 %v298
    %342 = vmatpush1.msra.mxu0 %v297
    %343 = vmatprep.subr.mxu0 %v300
    %344 = vmatpush1.msra.mxu0 %v299
    %345 = vmatprep.subr.mxu0 %v302
    %346 = vmatpush1.msra.mxu0 %v301
    %347 = vmatprep.subr.mxu0 0.0
    %348 = vmatpush1.msra.mxu0 0.0
    %349 = vmatprep.subr.mxu0 0.0
    %350 = vmatpush1.msra.mxu0 0.0
    %351 = vmatprep.subr.mxu0 0.0
    %352 = vmatpush1.msra.mxu0 0.0
    %353 = vmatprep.subr.mxu0 0.0
    %354 = vmatpush1.msra.mxu0 0.0
    %355 = vmatprep.subr.mxu0 0.0
    %356 = vmatpush1.msra.mxu0 0.0
    %357 = vmatprep.subr.mxu0 0.0
    %358 = vmatpush1.msra.mxu0 0.0
    %359 = vmatprep.subr.mxu0 0.0
    %360 = vmatpush1.msra.mxu0 0.0
    %361 = vmatprep.subr.mxu0 0.0
    %362 = vmatpush1.msra.mxu0 0.0
    %363 = vmatprep.subr.mxu0 0.0
    %364 = vmatpush1.msra.mxu0 0.0
    %365 = vmatprep.subr.mxu0 0.0
    %366 = vmatpush1.msra.mxu0 0.0
    %367 = vmatprep.subr.mxu0 0.0
    %368 = vmatpush1.msra.mxu0 0.0
    %369 = vmatprep.subr.mxu0 0.0
    %370 = vmatpush1.msra.mxu0 0.0
    %371 = vmatprep.subr.mxu0 0.0
    %372 = vmatpush1.msra.mxu0 0.0
    %373 = vmatprep.subr.mxu0 0.0
    %374 = vmatpush1.msra.mxu0 0.0
    %375 = vmatprep.subr.mxu0 0.0
    %376 = vmatpush1.msra.mxu0 0.0
    %377 = vmatprep.subr.mxu0 0.0
    %378 = vmatpush1.msra.mxu0 0.0
    %379 = vmatprep.mubr.f32.mxu0 0.0
    %380 = vmatmul.mubr.f32.gmra.mrb[0].mxu0 %v270
    %v381 = vpop.f32.mrb[0].mxu0
    %v382 = vadd.f32 %v308, %v381
    %v383 = vpop.f32.mrb[0].mxu0
    %v384 = vadd.f32 %v312, %v383
    %385 = vdwg.mxu0
    %v386 = vmax.f32 %v382, 0.0
    %v387 = vmax.f32 %v384, 0.0
    %v388 = vld [vmem:[#allocation6] sm:$0xff]
    %v389 = vld [vmem:[#allocation6 + $0x8] sm:$0xff]
    %v390 = vld [vmem:[#allocation6 + $0x10] sm:$0xff]
    %v391 = vld [vmem:[#allocation6 + $0x18] sm:$0xff]
    %v392 = vld [vmem:[#allocation6 + $0x20] sm:$0xff]
    %v393 = vld [vmem:[#allocation6 + $0x28] sm:$0xff]
    %v394 = vld [vmem:[#allocation6 + $0x30] sm:$0xff]
    %v395 = vld [vmem:[#allocation6 + $0x38] sm:$0xff]
    %v396 = vld [vmem:[#allocation6 + $0x40] sm:$0xff]
    %v397 = vld [vmem:[#allocation6 + $0x48] sm:$0xff]
    %v398 = vld [vmem:[#allocation6 + $0x50] sm:$0xff]
    %v399 = vld [vmem:[#allocation6 + $0x58] sm:$0xff]
    %v400 = vld [vmem:[#allocation6 + $0x60] sm:$0xff]
    %v401 = vld [vmem:[#allocation6 + $0x68] sm:$0xff]
    %v402 = vld [vmem:[#allocation6 + $0x70] sm:$0xff]
    %v403 = vld [vmem:[#allocation6 + $0x78] sm:$0xff]
    %v404 = vld [vmem:[#allocation6 + $0x80] sm:$0xff]
    %v405 = vld [vmem:[#allocation6 + $0x88] sm:$0xff]
    %v406 = vld [vmem:[#allocation6 + $0x90] sm:$0xff]
    %v407 = vld [vmem:[#allocation6 + $0x98] sm:$0xff]
    %v408 = vld [vmem:[#allocation6 + $0xa0] sm:$0xff]
    %v409 = vld [vmem:[#allocation6 + $0xa8] sm:$0xff]
    %v410 = vld [vmem:[#allocation6 + $0xb0] sm:$0xff]
    %v411 = vld [vmem:[#allocation6 + $0xb8] sm:$0xff]
    %v412 = vld [vmem:[#allocation6 + $0xc0] sm:$0xff]
    %v413 = vld [vmem:[#allocation6 + $0xc8] sm:$0xff]
    %v414 = vld [vmem:[#allocation6 + $0xd0] sm:$0xff]
    %v415 = vld [vmem:[#allocation6 + $0xd8] sm:$0xff]
    %v416 = vld [vmem:[#allocation6 + $0xe0] sm:$0xff]
    %v417 = vld [vmem:[#allocation6 + $0xe8] sm:$0xff]
    %v418 = vld [vmem:[#allocation6 + $0xf0] sm:$0xff]
    %v419 = vld [vmem:[#allocation6 + $0xf8] sm:$0xff]
    %v420 = vld [vmem:[#allocation6 + $0x100] sm:$0xff]
    %v421 = vld [vmem:[#allocation6 + $0x108] sm:$0xff]
    %v422 = vld [vmem:[#allocation6 + $0x110] sm:$0xff]
    %v423 = vld [vmem:[#allocation6 + $0x118] sm:$0xff]
    %v424 = vld [vmem:[#allocation6 + $0x120] sm:$0xff]
    %v425 = vld [vmem:[#allocation6 + $0x128] sm:$0xff]
    %v426 = vld [vmem:[#allocation6 + $0x130] sm:$0xff]
    %v427 = vld [vmem:[#allocation6 + $0x138] sm:$0xff]
    %v428 = vld [vmem:[#allocation6 + $0x140] sm:$0xff]
    %v429 = vld [vmem:[#allocation6 + $0x148] sm:$0xff]
    %v430 = vld [vmem:[#allocation6 + $0x150] sm:$0xff]
    %v431 = vld [vmem:[#allocation6 + $0x158] sm:$0xff]
    %v432 = vld [vmem:[#allocation6 + $0x160] sm:$0xff]
    %v433 = vld [vmem:[#allocation6 + $0x168] sm:$0xff]
    %v434 = vld [vmem:[#allocation6 + $0x170] sm:$0xff]
    %v435 = vld [vmem:[#allocation6 + $0x178] sm:$0xff]
    %v436 = vld [vmem:[#allocation6 + $0x180] sm:$0xff]
    %v437 = vld [vmem:[#allocation6 + $0x188] sm:$0xff]
    %v438 = vld [vmem:[#allocation6 + $0x190] sm:$0xff]
    %v439 = vld [vmem:[#allocation6 + $0x198] sm:$0xff]
    %v440 = vld [vmem:[#allocation6 + $0x1a0] sm:$0xff]
    %v441 = vld [vmem:[#allocation6 + $0x1a8] sm:$0xff]
    %v442 = vld [vmem:[#allocation6 + $0x1b0] sm:$0xff]
    %v443 = vld [vmem:[#allocation6 + $0x1b8] sm:$0xff]
    %v444 = vld [vmem:[#allocation6 + $0x1c0] sm:$0xff]
    %v445 = vld [vmem:[#allocation6 + $0x1c8] sm:$0xff]
    %v446 = vld [vmem:[#allocation6 + $0x1d0] sm:$0xff]
    %v447 = vld [vmem:[#allocation6 + $0x1d8] sm:$0xff]
    %v448 = vld [vmem:[#allocation6 + $0x1e0] sm:$0xff]
    %v449 = vld [vmem:[#allocation6 + $0x1e8] sm:$0xff]
    %v450 = vld [vmem:[#allocation6 + $0x1f0] sm:$0xff]
    %v451 = vld [vmem:[#allocation6 + $0x1f8] sm:$0xff]
    %v452 = vld [vmem:[#allocation6 + $0x200] sm:$0xff]
    %v453 = vld [vmem:[#allocation6 + $0x208] sm:$0xff]
    %v454 = vld [vmem:[#allocation6 + $0x210] sm:$0xff]
    %v455 = vld [vmem:[#allocation6 + $0x218] sm:$0xff]
    %v456 = vld [vmem:[#allocation6 + $0x220] sm:$0xff]
    %v457 = vld [vmem:[#allocation6 + $0x228] sm:$0xff]
    %v458 = vld [vmem:[#allocation6 + $0x230] sm:$0xff]
    %v459 = vld [vmem:[#allocation6 + $0x238] sm:$0xff]
    %v460 = vld [vmem:[#allocation6 + $0x240] sm:$0xff]
    %v461 = vld [vmem:[#allocation6 + $0x248] sm:$0xff]
    %v462 = vld [vmem:[#allocation6 + $0x250] sm:$0xff]
    %v463 = vld [vmem:[#allocation6 + $0x258] sm:$0xff]
    %v464 = vld [vmem:[#allocation6 + $0x260] sm:$0xff]
    %v465 = vld [vmem:[#allocation6 + $0x268] sm:$0xff]
    %v466 = vld [vmem:[#allocation6 + $0x270] sm:$0xff]
    %v467 = vld [vmem:[#allocation6 + $0x278] sm:$0xff]
    %v468 = vld [vmem:[#allocation6 + $0x280] sm:$0xff]
    %v469 = vld [vmem:[#allocation6 + $0x288] sm:$0xff]
    %v470 = vld [vmem:[#allocation6 + $0x290] sm:$0xff]
    %v471 = vld [vmem:[#allocation6 + $0x298] sm:$0xff]
    %v472 = vld [vmem:[#allocation6 + $0x2a0] sm:$0xff]
    %v473 = vld [vmem:[#allocation6 + $0x2a8] sm:$0xff]
    %v474 = vld [vmem:[#allocation6 + $0x2b0] sm:$0xff]
    %v475 = vld [vmem:[#allocation6 + $0x2b8] sm:$0xff]
    %v476 = vld [vmem:[#allocation6 + $0x2c0] sm:$0xff]
    %v477 = vld [vmem:[#allocation6 + $0x2c8] sm:$0xff]
    %v478 = vld [vmem:[#allocation6 + $0x2d0] sm:$0xff]
    %v479 = vld [vmem:[#allocation6 + $0x2d8] sm:$0xff]
    %v480 = vld [vmem:[#allocation6 + $0x2e0] sm:$0xff]
    %v481 = vld [vmem:[#allocation6 + $0x2e8] sm:$0xff]
    %v482 = vld [vmem:[#allocation6 + $0x2f0] sm:$0xff]
    %v483 = vld [vmem:[#allocation6 + $0x2f8] sm:$0xff]
    %v484 = vld [vmem:[#allocation6 + $0x300] sm:$0xff]
    %v485 = vld [vmem:[#allocation6 + $0x308] sm:$0xff]
    %v486 = vld [vmem:[#allocation6 + $0x310] sm:$0xff]
    %v487 = vld [vmem:[#allocation6 + $0x318] sm:$0xff]
    %v488 = vld [vmem:[#allocation6 + $0x320] sm:$0xff]
    %v489 = vld [vmem:[#allocation6 + $0x328] sm:$0xff]
    %v490 = vld [vmem:[#allocation6 + $0x330] sm:$0xff]
    %v491 = vld [vmem:[#allocation6 + $0x338] sm:$0xff]
    %v492 = vld [vmem:[#allocation6 + $0x340] sm:$0xff]
    %v493 = vld [vmem:[#allocation6 + $0x348] sm:$0xff]
    %v494 = vld [vmem:[#allocation6 + $0x350] sm:$0xff]
    %v495 = vld [vmem:[#allocation6 + $0x358] sm:$0xff]
    %v496 = vld [vmem:[#allocation6 + $0x360] sm:$0xff]
    %v497 = vld [vmem:[#allocation6 + $0x368] sm:$0xff]
    %v498 = vld [vmem:[#allocation6 + $0x370] sm:$0xff]
    %v499 = vld [vmem:[#allocation6 + $0x378] sm:$0xff]
    %v500 = vld [vmem:[#allocation6 + $0x380] sm:$0xff]
    %v501 = vld [vmem:[#allocation6 + $0x388] sm:$0xff]
    %v502 = vld [vmem:[#allocation6 + $0x390] sm:$0xff]
    %v503 = vld [vmem:[#allocation6 + $0x398] sm:$0xff]
    %v504 = vld [vmem:[#allocation6 + $0x3a0] sm:$0xff]
    %v505 = vld [vmem:[#allocation6 + $0x3a8] sm:$0xff]
    %v506 = vld [vmem:[#allocation6 + $0x3b0] sm:$0xff]
    %v507 = vld [vmem:[#allocation6 + $0x3b8] sm:$0xff]
    %v508 = vld [vmem:[#allocation6 + $0x3c0] sm:$0xff]
    %v509 = vld [vmem:[#allocation6 + $0x3c8] sm:$0xff]
    %v510 = vld [vmem:[#allocation6 + $0x3d0] sm:$0xff]
    %v511 = vld [vmem:[#allocation6 + $0x3d8] sm:$0xff]
    %v512 = vld [vmem:[#allocation6 + $0x3e0] sm:$0xff]
    %v513 = vld [vmem:[#allocation6 + $0x3e8] sm:$0xff]
    %v514 = vld [vmem:[#allocation6 + $0x3f0] sm:$0xff]
    %v515 = vld [vmem:[#allocation6 + $0x3f8] sm:$0xff]
    %v516 = vld [vmem:[%s8] sm:$0xf]
    %v518 = vlaneseq
    %v519 = vshrl.u32 %v518, 7
    %v520 = vsub.s32 0, %v519
    %v521 = vrot.slane %v516, %v520
    %v522 = vlaneseq
    %v523 = vshrl.u32 %v522, 7
    %v524 = vsub.s32 1, %v523
    %v525 = vrot.slane %v516, %v524
    %v526 = vlaneseq
    %v527 = vshrl.u32 %v526, 7
    %v528 = vsub.s32 2, %v527
    %v529 = vrot.slane %v516, %v528
    %v530 = vlaneseq
    %v531 = vshrl.u32 %v530, 7
    %v532 = vsub.s32 3, %v531
    %v533 = vrot.slane %v516, %v532
    %538 = vmatprep.subr.mxu0 %v389
    %539 = vmatpush1.msra.mxu0 %v388
    %540 = vmatprep.subr.mxu0 %v393
    %541 = vmatpush1.msra.mxu0 %v392
    %542 = vmatprep.subr.mxu0 %v397
    %543 = vmatpush1.msra.mxu0 %v396
    %544 = vmatprep.subr.mxu0 %v401
    %545 = vmatpush1.msra.mxu0 %v400
    %546 = vmatprep.subr.mxu0 %v405
    %547 = vmatpush1.msra.mxu0 %v404
    %548 = vmatprep.subr.mxu0 %v409
    %549 = vmatpush1.msra.mxu0 %v408
    %550 = vmatprep.subr.mxu0 %v413
    %551 = vmatpush1.msra.mxu0 %v412
    %552 = vmatprep.subr.mxu0 %v417
    %553 = vmatpush1.msra.mxu0 %v416
    %554 = vmatprep.subr.mxu0 %v421
    %555 = vmatpush1.msra.mxu0 %v420
    %556 = vmatprep.subr.mxu0 %v425
    %557 = vmatpush1.msra.mxu0 %v424
    %558 = vmatprep.subr.mxu0 %v429
    %559 = vmatpush1.msra.mxu0 %v428
    %560 = vmatprep.subr.mxu0 %v433
    %561 = vmatpush1.msra.mxu0 %v432
    %562 = vmatprep.subr.mxu0 %v437
    %563 = vmatpush1.msra.mxu0 %v436
    %564 = vmatprep.subr.mxu0 %v441
    %565 = vmatpush1.msra.mxu0 %v440
    %566 = vmatprep.subr.mxu0 %v445
    %567 = vmatpush1.msra.mxu0 %v444
    %568 = vmatprep.subr.mxu0 %v449
    %569 = vmatpush1.msra.mxu0 %v448
    %570 = vmatprep.subr.mxu0 %v453
    %571 = vmatpush1.msra.mxu0 %v452
    %572 = vmatprep.subr.mxu0 %v457
    %573 = vmatpush1.msra.mxu0 %v456
    %574 = vmatprep.subr.mxu0 %v461
    %575 = vmatpush1.msra.mxu0 %v460
    %576 = vmatprep.subr.mxu0 %v465
    %577 = vmatpush1.msra.mxu0 %v464
    %578 = vmatprep.subr.mxu0 %v469
    %579 = vmatpush1.msra.mxu0 %v468
    %580 = vmatprep.subr.mxu0 %v473
    %581 = vmatpush1.msra.mxu0 %v472
    %582 = vmatprep.subr.mxu0 %v477
    %583 = vmatpush1.msra.mxu0 %v476
    %584 = vmatprep.subr.mxu0 %v481
    %585 = vmatpush1.msra.mxu0 %v480
    %586 = vmatprep.subr.mxu0 %v485
    %587 = vmatpush1.msra.mxu0 %v484
    %588 = vmatprep.subr.mxu0 %v489
    %589 = vmatpush1.msra.mxu0 %v488
    %590 = vmatprep.subr.mxu0 %v493
    %591 = vmatpush1.msra.mxu0 %v492
    %592 = vmatprep.subr.mxu0 %v497
    %593 = vmatpush1.msra.mxu0 %v496
    %594 = vmatprep.subr.mxu0 %v501
    %595 = vmatpush1.msra.mxu0 %v500
    %596 = vmatprep.subr.mxu0 %v505
    %597 = vmatpush1.msra.mxu0 %v504
    %598 = vmatprep.subr.mxu0 %v509
    %599 = vmatpush1.msra.mxu0 %v508
    %600 = vmatprep.subr.mxu0 %v513
    %601 = vmatpush1.msra.mxu0 %v512
    %602 = vmatprep.mubr.f32.mxu0 %v387
    %603 = vmatmul.mubr.f32.gmra.mrb[0].mxu0 %v386
    %v604 = vpop.f32.mrb[0].mxu0
    %v605 = vadd.f32 %v521, %v604
    %v606 = vpop.f32.mrb[0].mxu0
    %v607 = vadd.f32 %v525, %v606
    %608 = vdwg.mxu0
    %609 = vmatprep.subr.mxu0 %v391
    %610 = vmatpush1.msra.mxu0 %v390
    %611 = vmatprep.subr.mxu0 %v395
    %612 = vmatpush1.msra.mxu0 %v394
    %613 = vmatprep.subr.mxu0 %v399
    %614 = vmatpush1.msra.mxu0 %v398
    %615 = vmatprep.subr.mxu0 %v403
    %616 = vmatpush1.msra.mxu0 %v402
    %617 = vmatprep.subr.mxu0 %v407
    %618 = vmatpush1.msra.mxu0 %v406
    %619 = vmatprep.subr.mxu0 %v411
    %620 = vmatpush1.msra.mxu0 %v410
    %621 = vmatprep.subr.mxu0 %v415
    %622 = vmatpush1.msra.mxu0 %v414
    %623 = vmatprep.subr.mxu0 %v419
    %624 = vmatpush1.msra.mxu0 %v418
    %625 = vmatprep.subr.mxu0 %v423
    %626 = vmatpush1.msra.mxu0 %v422
    %627 = vmatprep.subr.mxu0 %v427
    %628 = vmatpush1.msra.mxu0 %v426
    %629 = vmatprep.subr.mxu0 %v431
    %630 = vmatpush1.msra.mxu0 %v430
    %631 = vmatprep.subr.mxu0 %v435
    %632 = vmatpush1.msra.mxu0 %v434
    %633 = vmatprep.subr.mxu0 %v439
    %634 = vmatpush1.msra.mxu0 %v438
    %635 = vmatprep.subr.mxu0 %v443
    %636 = vmatpush1.msra.mxu0 %v442
    %637 = vmatprep.subr.mxu0 %v447
    %638 = vmatpush1.msra.mxu0 %v446
    %639 = vmatprep.subr.mxu0 %v451
    %640 = vmatpush1.msra.mxu0 %v450
    %641 = vmatprep.subr.mxu0 %v455
    %642 = vmatpush1.msra.mxu0 %v454
    %643 = vmatprep.subr.mxu0 %v459
    %644 = vmatpush1.msra.mxu0 %v458
    %645 = vmatprep.subr.mxu0 %v463
    %646 = vmatpush1.msra.mxu0 %v462
    %647 = vmatprep.subr.mxu0 %v467
    %648 = vmatpush1.msra.mxu0 %v466
    %649 = vmatprep.subr.mxu0 %v471
    %650 = vmatpush1.msra.mxu0 %v470
    %651 = vmatprep.subr.mxu0 %v475
    %652 = vmatpush1.msra.mxu0 %v474
    %653 = vmatprep.subr.mxu0 %v479
    %654 = vmatpush1.msra.mxu0 %v478
    %655 = vmatprep.subr.mxu0 %v483
    %656 = vmatpush1.msra.mxu0 %v482
    %657 = vmatprep.subr.mxu0 %v487
    %658 = vmatpush1.msra.mxu0 %v486
    %659 = vmatprep.subr.mxu0 %v491
    %660 = vmatpush1.msra.mxu0 %v490
    %661 = vmatprep.subr.mxu0 %v495
    %662 = vmatpush1.msra.mxu0 %v494
    %663 = vmatprep.subr.mxu0 %v499
    %664 = vmatpush1.msra.mxu0 %v498
    %665 = vmatprep.subr.mxu0 %v503
    %666 = vmatpush1.msra.mxu0 %v502
    %667 = vmatprep.subr.mxu0 %v507
    %668 = vmatpush1.msra.mxu0 %v506
    %669 = vmatprep.subr.mxu0 %v511
    %670 = vmatpush1.msra.mxu0 %v510
    %671 = vmatprep.subr.mxu0 %v515
    %672 = vmatpush1.msra.mxu0 %v514
    %673 = vmatprep.mubr.f32.mxu0 %v387
    %674 = vmatmul.mubr.f32.gmra.mrb[0].mxu0 %v386
    %v675 = vpop.f32.mrb[0].mxu0
    %v676 = vadd.f32 %v529, %v675
    %v677 = vpop.f32.mrb[0].mxu0
    %v678 = vadd.f32 %v533, %v677
    %679 = vdwg.mxu0
    %v680 = vmax.f32 %v605, 0.0
    %v681 = vmax.f32 %v607, 0.0
    %v682 = vmax.f32 %v676, 0.0
    %v683 = vmax.f32 %v678, 0.0
    %v684 = vld [vmem:[#allocation7] sm:$0xff]
    %v685 = vld [vmem:[#allocation7 + $0x8] sm:$0xff]
    %v686 = vld [vmem:[#allocation7 + $0x10] sm:$0xff]
    %v687 = vld [vmem:[#allocation7 + $0x18] sm:$0xff]
    %v688 = vld [vmem:[#allocation7 + $0x20] sm:$0xff]
    %v689 = vld [vmem:[#allocation7 + $0x28] sm:$0xff]
    %v690 = vld [vmem:[#allocation7 + $0x30] sm:$0xff]
    %v691 = vld [vmem:[#allocation7 + $0x38] sm:$0xff]
    %v692 = vld [vmem:[#allocation7 + $0x40] sm:$0xff]
    %v693 = vld [vmem:[#allocation7 + $0x48] sm:$0xff]
    %v694 = vld [vmem:[#allocation7 + $0x50] sm:$0xff]
    %v695 = vld [vmem:[#allocation7 + $0x58] sm:$0xff]
    %v696 = vld [vmem:[#allocation7 + $0x60] sm:$0xff]
    %v697 = vld [vmem:[#allocation7 + $0x68] sm:$0xff]
    %v698 = vld [vmem:[#allocation7 + $0x70] sm:$0xff]
    %v699 = vld [vmem:[#allocation7 + $0x78] sm:$0xff]
    %v700 = vld [vmem:[#allocation7 + $0x80] sm:$0xff]
    %v701 = vld [vmem:[#allocation7 + $0x88] sm:$0xff]
    %v702 = vld [vmem:[#allocation7 + $0x90] sm:$0xff]
    %v703 = vld [vmem:[#allocation7 + $0x98] sm:$0xff]
    %v704 = vld [vmem:[#allocation7 + $0xa0] sm:$0xff]
    %v705 = vld [vmem:[#allocation7 + $0xa8] sm:$0xff]
    %v706 = vld [vmem:[#allocation7 + $0xb0] sm:$0xff]
    %v707 = vld [vmem:[#allocation7 + $0xb8] sm:$0xff]
    %v708 = vld [vmem:[#allocation7 + $0xc0] sm:$0xff]
    %v709 = vld [vmem:[#allocation7 + $0xc8] sm:$0xff]
    %v710 = vld [vmem:[#allocation7 + $0xd0] sm:$0xff]
    %v711 = vld [vmem:[#allocation7 + $0xd8] sm:$0xff]
    %v712 = vld [vmem:[#allocation7 + $0xe0] sm:$0xff]
    %v713 = vld [vmem:[#allocation7 + $0xe8] sm:$0xff]
    %v714 = vld [vmem:[#allocation7 + $0xf0] sm:$0xff]
    %v715 = vld [vmem:[#allocation7 + $0xf8] sm:$0xff]
    %v716 = vld [vmem:[#allocation7 + $0x100] sm:$0xff]
    %v717 = vld [vmem:[#allocation7 + $0x108] sm:$0xff]
    %v718 = vld [vmem:[#allocation7 + $0x110] sm:$0xff]
    %v719 = vld [vmem:[#allocation7 + $0x118] sm:$0xff]
    %v720 = vld [vmem:[#allocation7 + $0x120] sm:$0xff]
    %v721 = vld [vmem:[#allocation7 + $0x128] sm:$0xff]
    %v722 = vld [vmem:[#allocation7 + $0x130] sm:$0xff]
    %v723 = vld [vmem:[#allocation7 + $0x138] sm:$0xff]
    %v724 = vld [vmem:[#allocation7 + $0x140] sm:$0xff]
    %v725 = vld [vmem:[#allocation7 + $0x148] sm:$0xff]
    %v726 = vld [vmem:[#allocation7 + $0x150] sm:$0xff]
    %v727 = vld [vmem:[#allocation7 + $0x158] sm:$0xff]
    %v728 = vld [vmem:[#allocation7 + $0x160] sm:$0xff]
    %v729 = vld [vmem:[#allocation7 + $0x168] sm:$0xff]
    %v730 = vld [vmem:[#allocation7 + $0x170] sm:$0xff]
    %v731 = vld [vmem:[#allocation7 + $0x178] sm:$0xff]
    %v732 = vld [vmem:[#allocation7 + $0x180] sm:$0xff]
    %v733 = vld [vmem:[#allocation7 + $0x188] sm:$0xff]
    %v734 = vld [vmem:[#allocation7 + $0x190] sm:$0xff]
    %v735 = vld [vmem:[#allocation7 + $0x198] sm:$0xff]
    %v736 = vld [vmem:[#allocation7 + $0x1a0] sm:$0xff]
    %v737 = vld [vmem:[#allocation7 + $0x1a8] sm:$0xff]
    %v738 = vld [vmem:[#allocation7 + $0x1b0] sm:$0xff]
    %v739 = vld [vmem:[#allocation7 + $0x1b8] sm:$0xff]
    %v740 = vld [vmem:[#allocation7 + $0x1c0] sm:$0xff]
    %v741 = vld [vmem:[#allocation7 + $0x1c8] sm:$0xff]
    %v742 = vld [vmem:[#allocation7 + $0x1d0] sm:$0xff]
    %v743 = vld [vmem:[#allocation7 + $0x1d8] sm:$0xff]
    %v744 = vld [vmem:[#allocation7 + $0x1e0] sm:$0xff]
    %v745 = vld [vmem:[#allocation7 + $0x1e8] sm:$0xff]
    %v746 = vld [vmem:[#allocation7 + $0x1f0] sm:$0xff]
    %v747 = vld [vmem:[#allocation7 + $0x1f8] sm:$0xff]
    %v748 = vld [vmem:[%s10] sm:$0x1]
    %v750 = vlaneseq
    %v751 = vshrl.u32 %v750, 7
    %v752 = vsub.s32 0, %v751
    %v753 = vrot.slane %v748, %v752
    %755 = vmatprep.subr.mxu0 0.0
    %756 = vmatpush1.msra.mxu0 %v684
    %757 = vmatprep.subr.mxu0 0.0
    %758 = vmatpush1.msra.mxu0 %v685
    %759 = vmatprep.subr.mxu0 0.0
    %760 = vmatpush1.msra.mxu0 %v686
    %761 = vmatprep.subr.mxu0 0.0
    %762 = vmatpush1.msra.mxu0 %v687
    %763 = vmatprep.subr.mxu0 0.0
    %764 = vmatpush1.msra.mxu0 %v688
    %765 = vmatprep.subr.mxu0 0.0
    %766 = vmatpush1.msra.mxu0 %v689
    %767 = vmatprep.subr.mxu0 0.0
    %768 = vmatpush1.msra.mxu0 %v690
    %769 = vmatprep.subr.mxu0 0.0
    %770 = vmatpush1.msra.mxu0 %v691
    %771 = vmatprep.subr.mxu0 0.0
    %772 = vmatpush1.msra.mxu0 %v692
    %773 = vmatprep.subr.mxu0 0.0
    %774 = vmatpush1.msra.mxu0 %v693
    %775 = vmatprep.subr.mxu0 0.0
    %776 = vmatpush1.msra.mxu0 %v694
    %777 = vmatprep.subr.mxu0 0.0
    %778 = vmatpush1.msra.mxu0 %v695
    %779 = vmatprep.subr.mxu0 0.0
    %780 = vmatpush1.msra.mxu0 %v696
    %781 = vmatprep.subr.mxu0 0.0
    %782 = vmatpush1.msra.mxu0 %v697
    %783 = vmatprep.subr.mxu0 0.0
    %784 = vmatpush1.msra.mxu0 %v698
    %785 = vmatprep.subr.mxu0 0.0
    %786 = vmatpush1.msra.mxu0 %v699
    %787 = vmatprep.subr.mxu0 0.0
    %788 = vmatpush1.msra.mxu0 %v700
    %789 = vmatprep.subr.mxu0 0.0
    %790 = vmatpush1.msra.mxu0 %v701
    %791 = vmatprep.subr.mxu0 0.0
    %792 = vmatpush1.msra.mxu0 %v702
    %793 = vmatprep.subr.mxu0 0.0
    %794 = vmatpush1.msra.mxu0 %v703
    %795 = vmatprep.subr.mxu0 0.0
    %796 = vmatpush1.msra.mxu0 %v704
    %797 = vmatprep.subr.mxu0 0.0
    %798 = vmatpush1.msra.mxu0 %v705
    %799 = vmatprep.subr.mxu0 0.0
    %800 = vmatpush1.msra.mxu0 %v706
    %801 = vmatprep.subr.mxu0 0.0
    %802 = vmatpush1.msra.mxu0 %v707
    %803 = vmatprep.subr.mxu0 0.0
    %804 = vmatpush1.msra.mxu0 %v708
    %805 = vmatprep.subr.mxu0 0.0
    %806 = vmatpush1.msra.mxu0 %v709
    %807 = vmatprep.subr.mxu0 0.0
    %808 = vmatpush1.msra.mxu0 %v710
    %809 = vmatprep.subr.mxu0 0.0
    %810 = vmatpush1.msra.mxu0 %v711
    %811 = vmatprep.subr.mxu0 0.0
    %812 = vmatpush1.msra.mxu0 %v712
    %813 = vmatprep.subr.mxu0 0.0
    %814 = vmatpush1.msra.mxu0 %v713
    %815 = vmatprep.subr.mxu0 0.0
    %816 = vmatpush1.msra.mxu0 %v714
    %817 = vmatprep.subr.mxu0 0.0
    %818 = vmatpush1.msra.mxu0 %v715
    %819 = vmatprep.mubr.f32.mxu0 %v681
    %820 = vmatmul.mubr.f32.gmra.mrb[0].mxu0 %v680
    %v821 = vpop.f32.mrb[0].mxu0
    %v822 = vadd.f32 %v753, %v821
    %v823 = vpop.f32.mrb[0].mxu0
    %824 = vdwg.mxu0
    %825 = vmatprep.subr.mxu0 0.0
    %826 = vmatpush1.msra.mxu0 %v716
    %827 = vmatprep.subr.mxu0 0.0
    %828 = vmatpush1.msra.mxu0 %v717
    %829 = vmatprep.subr.mxu0 0.0
    %830 = vmatpush1.msra.mxu0 %v718
    %831 = vmatprep.subr.mxu0 0.0
    %832 = vmatpush1.msra.mxu0 %v719
    %833 = vmatprep.subr.mxu0 0.0
    %834 = vmatpush1.msra.mxu0 %v720
    %835 = vmatprep.subr.mxu0 0.0
    %836 = vmatpush1.msra.mxu0 %v721
    %837 = vmatprep.subr.mxu0 0.0
    %838 = vmatpush1.msra.mxu0 %v722
    %839 = vmatprep.subr.mxu0 0.0
    %840 = vmatpush1.msra.mxu0 %v723
    %841 = vmatprep.subr.mxu0 0.0
    %842 = vmatpush1.msra.mxu0 %v724
    %843 = vmatprep.subr.mxu0 0.0
    %844 = vmatpush1.msra.mxu0 %v725
    %845 = vmatprep.subr.mxu0 0.0
    %846 = vmatpush1.msra.mxu0 %v726
    %847 = vmatprep.subr.mxu0 0.0
    %848 = vmatpush1.msra.mxu0 %v727
    %849 = vmatprep.subr.mxu0 0.0
    %850 = vmatpush1.msra.mxu0 %v728
    %851 = vmatprep.subr.mxu0 0.0
    %852 = vmatpush1.msra.mxu0 %v729
    %853 = vmatprep.subr.mxu0 0.0
    %854 = vmatpush1.msra.mxu0 %v730
    %855 = vmatprep.subr.mxu0 0.0
    %856 = vmatpush1.msra.mxu0 %v731
    %857 = vmatprep.subr.mxu0 0.0
    %858 = vmatpush1.msra.mxu0 %v732
    %859 = vmatprep.subr.mxu0 0.0
    %860 = vmatpush1.msra.mxu0 %v733
    %861 = vmatprep.subr.mxu0 0.0
    %862 = vmatpush1.msra.mxu0 %v734
    %863 = vmatprep.subr.mxu0 0.0
    %864 = vmatpush1.msra.mxu0 %v735
    %865 = vmatprep.subr.mxu0 0.0
    %866 = vmatpush1.msra.mxu0 %v736
    %867 = vmatprep.subr.mxu0 0.0
    %868 = vmatpush1.msra.mxu0 %v737
    %869 = vmatprep.subr.mxu0 0.0
    %870 = vmatpush1.msra.mxu0 %v738
    %871 = vmatprep.subr.mxu0 0.0
    %872 = vmatpush1.msra.mxu0 %v739
    %873 = vmatprep.subr.mxu0 0.0
    %874 = vmatpush1.msra.mxu0 %v740
    %875 = vmatprep.subr.mxu0 0.0
    %876 = vmatpush1.msra.mxu0 %v741
    %877 = vmatprep.subr.mxu0 0.0
    %878 = vmatpush1.msra.mxu0 %v742
    %879 = vmatprep.subr.mxu0 0.0
    %880 = vmatpush1.msra.mxu0 %v743
    %881 = vmatprep.subr.mxu0 0.0
    %882 = vmatpush1.msra.mxu0 %v744
    %883 = vmatprep.subr.mxu0 0.0
    %884 = vmatpush1.msra.mxu0 %v745
    %885 = vmatprep.subr.mxu0 0.0
    %886 = vmatpush1.msra.mxu0 %v746
    %887 = vmatprep.subr.mxu0 0.0
    %888 = vmatpush1.msra.mxu0 %v747
    %889 = vmatprep.mubr.f32.mxu0 %v683
    %890 = vmatmul.mubr.f32.gmra.mrb[0].mxu0 %v682
    %v891 = vpop.f32.mrb[0].mxu0
    %v892 = vadd.f32 %v822, %v891
    %v893 = vpop.f32.mrb[0].mxu0
    %894 = vdwg.mxu0
    %895 = vst [vmem:[%s11] sm:$0xff] %v892
    // Predicated region
    $region62: #{dqn_forward.1} parent=1 // pred_check
      _
    $region63: #{dqn_forward.1} parent=1 // pred_check_branch
      %897 = sbr.rel (0) target = $region65
    $region64: #{dqn_forward.1} parent=1 // pred_region
      _
    $region65: #{dqn_forward.1} parent=1 // pred_fallthru
      _
    // Predicated region
    $region66: #{dqn_forward.1} parent=1 // pred_check
      _
    $region67: #{dqn_forward.1} parent=1 // pred_check_branch
      %899 = sbr.rel (0) target = $region69
    $region68: #{dqn_forward.1} parent=1 // pred_region
      _
    $region69: #{dqn_forward.1} parent=1 // pred_fallthru
      _
    %900 = vsyncpa [#allocation3], 1
    %901 = vsyncpa [#allocation5], 1
    %902 = vsyncpa [#allocation8], 1

</llo_original>
